<compile_context>
chip_gen: v5e
topology: v5e:2x2
jax: 0.10.0
libtpu: 0.0.40
codegen_flags: <defaults>
</compile_context>

<pallas_src>
import math
import numpy as np
import jax
import jax.numpy as jnp
from jax.experimental import pallas as pl
from jax.experimental.pallas import tpu as pltpu

# ----------------------------- configuration --------------------------------
B, C, H, W = 2, 16, 16, 16
HW = H * W                                   # 256
CHW = C * H * W                              # 4096 = 32 * 128 (lane-aligned K)
# (kh, kw) of the five deformable convs in MultiScaleConv
MS_KERNELS = [(3, 50), (5, 25), (7, 15), (10, 10), (15, 3)]


# --------------------------- the Pallas kernel -------------------------------
def _msconv_kernel(x_ref, w_ref, o_ref):
    # x: (B, CHW)  bf16 flattened NCHW input
    # w: (C, CHW)  bf16 folded (gather-free) deform weights
    # o: (B, C, HW) f32 spatially-constant result, stored lane-dense (HW = 256)
    res = jax.lax.dot_general(
        w_ref[...], x_ref[...],
        dimension_numbers=(((1,), (1,)), ((), ())),      # contract CHW with CHW
        preferred_element_type=jnp.float32)              # -> (C, B), f32 accum
    for b in range(B):                                   # B = 2, static unroll
        col = res[:, b:b + 1]                            # (C, 1), C on sublanes
        o_ref[b] = jnp.broadcast_to(col, (C, HW))        # unmasked 256-wide vst


def multi_scale_conv_pallas(x_flat, w_fold):
    return pl.pallas_call(
        _msconv_kernel,
        out_shape=jax.ShapeDtypeStruct((B, C, HW), jnp.float32),
        grid=(1,),
        in_specs=[pl.BlockSpec((B, CHW), lambda i: (0, 0)),   # block == full array
                  pl.BlockSpec((C, CHW), lambda i: (0, 0))],
        out_specs=pl.BlockSpec((B, C, HW), lambda i: (0, 0, 0)),
        compiler_params=pltpu.CompilerParams(
            dimension_semantics=("arbitrary",)),
    )(x_flat, w_fold)


# -------------------- one-time (init) weight folding -------------------------
def build_folded_weight(ms_weights):
    """Fold the zero-offset gather into the weights: for each scale and each
    in-range tap k=(ky,kx), scatter-add the c-major-flattened weight slice
    wflat[:, k*C:(k+1)*C] onto image position (dy_k, dx_k).  Taps outside the
    image are dropped (grid_sample padding_mode='zeros').  Host/numpy, runs
    once at init — completely outside the per-forward jit."""
    wf = np.zeros((C, C, H, W), np.float32)
    for (kh, kw), wgt in zip(MS_KERNELS, ms_weights):
        wflat = np.asarray(wgt, np.float32).reshape(C, C * kh * kw)  # c-major
        dy = np.arange(-(kh - 1) // 2, (kh - 1) // 2 + 1)
        dx = np.arange(-(kw - 1) // 2, (kw - 1) // 2 + 1)
        for ky in range(kh):
            for kx in range(kw):
                yy, xx = int(dy[ky]), int(dx[kx])
                if 0 <= yy < H and 0 <= xx < W:
                    k = ky * kw + kx                     # k-major sample index
                    wf[:, :, yy, xx] += wflat[:, k * C:(k + 1) * C]
    return jnp.asarray(wf.reshape(C, CHW), dtype=jnp.bfloat16)


# ------------------------------- forward --------------------------------------
@jax.jit
def multi_scale_conv(x, w_fold):
    # Per-forward work: free contiguous reshape + bf16 cast + one pallas_call.
    x_flat = x.reshape(B, CHW).astype(jnp.bfloat16)
    out = multi_scale_conv_pallas(x_flat, w_fold)        # (B, C, HW)
    return out.reshape(B, C, H, W)


# -------------------------- pure-JAX reference -------------------------------
def reference_multi_scale_conv(x, ms_weights):
    """Tap-by-tap f32 re-implementation of the reference deform_conv2d (zero
    offsets), used only to validate the Pallas kernel's plumbing."""
    total = jnp.zeros((B, C), jnp.float32)
    for (kh, kw), wgt in zip(MS_KERNELS, ms_weights):
        dy = np.arange(-(kh - 1) // 2, (kh - 1) // 2 + 1)
        dx = np.arange(-(kw - 1) // 2, (kw - 1) // 2 + 1)
        taps = []
        for ky in range(kh):
            for kx in range(kw):
                yy, xx = int(dy[ky]), int(dx[kx])
                if 0 <= yy <= H - 1 and 0 <= xx <= W - 1:
                    taps.append(x[:, :, yy, xx])                # (B, C)
                else:
                    taps.append(jnp.zeros((B, C), jnp.float32))
        samp = jnp.stack(taps, axis=1).reshape(B, kh * kw * C)  # k-major
        wflat = wgt.reshape(C, -1)                              # c-major
        total = total + samp @ wflat.T
    return jnp.broadcast_to(total[:, :, None, None], (B, C, H, W))


# --------------------------------- init ---------------------------------------
def init_weights(key):
    ms_weights = []
    keys = jax.random.split(key, len(MS_KERNELS))
    for k, (kh, kw) in zip(keys, MS_KERNELS):
        bound = math.sqrt(6.0 / (C * kh * kw))                  # kaiming_uniform_
        ms_weights.append(jax.random.uniform(
            k, (C, C, kh, kw), jnp.float32, -bound, bound))
    # offset_conv weights/bias and conv bias are zero-init -> contribute nothing
    return ms_weights


if __name__ == "__main__":
    key = jax.random.PRNGKey(0)
    wkey, xkey = jax.random.split(key)
    ms_weights = init_weights(wkey)
    x = jax.random.normal(xkey, (B, C, H, W), dtype=jnp.float32)

    # one-time weight fold (hoisted out of the forward path)
    w_fold = build_folded_weight(ms_weights)

    out = jax.block_until_ready(multi_scale_conv(x, w_fold))

    assert out.shape == (B, C, H, W), out.shape
    assert bool(jnp.all(jnp.isfinite(out)))

    # plumbing check against the pure-JAX f32 reference (tolerance absorbs the
    # bf16 operand cast; accumulation stays f32)
    ref = reference_multi_scale_conv(x, ms_weights)
    np.testing.assert_allclose(np.asarray(out), np.asarray(ref),
                               rtol=5e-2, atol=5e-2)

    print("KERNEL_OK")
</pallas_src>

<mosaic_0001>
module attributes {stable_mosaic.version = 11 : i64} {
  func.func @_msconv_kernel(%arg0: i32, %arg1: memref<2x4096xbf16, #tpu.memory_space<vmem>>, %arg2: memref<16x4096xbf16, #tpu.memory_space<vmem>>, %arg3: memref<2x16x256xf32, #tpu.memory_space<vmem>>) attributes {dimension_semantics = [#tpu.dimension_semantics<arbitrary>], iteration_bounds = array<i64: 1>, scalar_prefetch = 0 : i64, scratch_operands = 0 : i64, tpu.core_type = #tpu.core_type<tc>, window_params = [{pipeline_mode = #tpu.pipeline_mode<synchronous>, transform_indices = @transform_0, window_bounds = array<i64: 2, 4096>}, {pipeline_mode = #tpu.pipeline_mode<synchronous>, transform_indices = @transform_1, window_bounds = array<i64: 16, 4096>}, {pipeline_mode = #tpu.pipeline_mode<synchronous>, transform_indices = @transform_2, window_bounds = array<i64: 2, 16, 256>}]} {
    %c0 = arith.constant 0 : index
    %c0_0 = arith.constant 0 : index
    %0 = vector.load %arg2[%c0, %c0_0] : memref<16x4096xbf16, #tpu.memory_space<vmem>>, vector<16x4096xbf16>
    %c0_1 = arith.constant 0 : index
    %c0_2 = arith.constant 0 : index
    %1 = vector.load %arg1[%c0_1, %c0_2] : memref<2x4096xbf16, #tpu.memory_space<vmem>>, vector<2x4096xbf16>
    %cst = arith.constant dense<0.000000e+00> : vector<16x2xf32>
    %2 = tpu.matmul %0, %1, %cst {dimension_numbers = #tpu.dot_dimension_numbers<[1], [1], [0], [0], [0, 0, 1, 0], [], []>} : vector<16x4096xbf16>, vector<2x4096xbf16>, vector<16x2xf32> -> vector<16x2xf32>
    %3 = vector.extract_strided_slice %2 {offsets = [0, 0], sizes = [16, 1], strides = [1, 1]} : vector<16x2xf32> to vector<16x1xf32>
    %4 = vector.shape_cast %3 : vector<16x1xf32> to vector<16x1xf32>
    %5 = vector.broadcast %4 : vector<16x1xf32> to vector<16x256xf32>
    %c0_3 = arith.constant 0 : index
    %c0_4 = arith.constant 0 : index
    %c0_5 = arith.constant 0 : index
    %6 = vector.load %arg3[%c0_3, %c0_4, %c0_5] : memref<2x16x256xf32, #tpu.memory_space<vmem>>, vector<1x16x256xf32>
    %7 = vector.shape_cast %6 : vector<1x16x256xf32> to vector<16x256xf32>
    %8 = vector.shape_cast %5 : vector<16x256xf32> to vector<1x16x256xf32>
    tpu.vector_store %arg3[%c0_3, %c0_4, %c0_5], %8 {strides = array<i32>} : memref<2x16x256xf32, #tpu.memory_space<vmem>>, vector<1x16x256xf32>,
    %9 = vector.extract_strided_slice %2 {offsets = [0, 1], sizes = [16, 1], strides = [1, 1]} : vector<16x2xf32> to vector<16x1xf32>
    %10 = vector.shape_cast %9 : vector<16x1xf32> to vector<16x1xf32>
    %11 = vector.broadcast %10 : vector<16x1xf32> to vector<16x256xf32>
    %c1 = arith.constant 1 : index
    %c0_6 = arith.constant 0 : index
    %c0_7 = arith.constant 0 : index
    %12 = vector.load %arg3[%c1, %c0_6, %c0_7] : memref<2x16x256xf32, #tpu.memory_space<vmem>>, vector<1x16x256xf32>
    %13 = vector.shape_cast %12 : vector<1x16x256xf32> to vector<16x256xf32>
    %14 = vector.shape_cast %11 : vector<16x256xf32> to vector<1x16x256xf32>
    tpu.vector_store %arg3[%c1, %c0_6, %c0_7], %14 {strides = array<i32>} : memref<2x16x256xf32, #tpu.memory_space<vmem>>, vector<1x16x256xf32>,
    return
  }
  func.func @transform_0(%arg0: i32) -> (i32, i32) {
    %c0_i32 = arith.constant 0 : i32
    %c0_i32_0 = arith.constant 0 : i32
    %c0_i32_1 = arith.constant 0 : i32
    return %c0_i32, %c0_i32_0 : i32, i32
  }
  func.func @transform_1(%arg0: i32) -> (i32, i32) {
    %c0_i32 = arith.constant 0 : i32
    %c0_i32_0 = arith.constant 0 : i32
    %c0_i32_1 = arith.constant 0 : i32
    return %c0_i32, %c0_i32_0 : i32, i32
  }
  func.func @transform_2(%arg0: i32) -> (i32, i32, i32) {
    %c0_i32 = arith.constant 0 : i32
    %c0_i32_0 = arith.constant 0 : i32
    %c0_i32_1 = arith.constant 0 : i32
    %c0_i32_2 = arith.constant 0 : i32
    return %c0_i32, %c0_i32_0, %c0_i32_1 : i32, i32, i32
  }
}

</mosaic_0001>

<llo_original>
// kernel: multi_scale_conv.1
$region0: #{multi_scale_conv.1}
  #allocation0 [shape = 'u32[]', space=smem, size = 0x4, offset = 0x4, fixed_abs, tag = 'smem constant byte address 0x4 - core index']
  #allocation1 [shape = 'u32[72,128]{1,0:T(1,128)}', space=vmem, size = 0x9000, scoped, tag = 'internal scratch']
  %s0 = inlined_call_operand.vmem [shape: bf16[2,4096], index: 0, kind: input, shape index: {}]
  %s1 = inlined_call_operand.vmem [shape: bf16[16,4096], index: 1, kind: input, shape index: {}]
  %s2 = inlined_call_operand.vmem [shape: f32[2,16,256], index: 2, kind: output, shape index: {}]
  %s3 = sld [smem:[#allocation0]]
  $region18: #{multi_scale_conv.1} parent=0
    _
  %s5 = ssub.s32 1, %s3
  %s6 = scalar_select 0, %s5, %s3
  // Predicated region
  $region2: #{multi_scale_conv.1} parent=0 // pred_check
    _
  $region3: #{multi_scale_conv.1} parent=0 // pred_check_branch
    %8 = sbr.rel (0) target = $region5
  $region4: #{multi_scale_conv.1} parent=0 // pred_region
    _
  $region5: #{multi_scale_conv.1} parent=0 // pred_fallthru
    _
  // Predicated region
  $region6: #{multi_scale_conv.1} parent=0 // pred_check
    _
  $region7: #{multi_scale_conv.1} parent=0 // pred_check_branch
    %10 = sbr.rel (0) target = $region9
  $region8: #{multi_scale_conv.1} parent=0 // pred_region
    _
  $region9: #{multi_scale_conv.1} parent=0 // pred_fallthru
    _
  %v12 = vld [vmem:[%s1] sm:$0xff]
  %v13 = vld [vmem:[%s1 + $0x8] sm:$0xff]
  %v14 = vld [vmem:[%s1 + $0x10] sm:$0xff]
  %v15 = vld [vmem:[%s1 + $0x18] sm:$0xff]
  %v16 = vld [vmem:[%s1 + $0x20] sm:$0xff]
  %v17 = vld [vmem:[%s1 + $0x28] sm:$0xff]
  %v18 = vld [vmem:[%s1 + $0x30] sm:$0xff]
  %v19 = vld [vmem:[%s1 + $0x38] sm:$0xff]
  %v20 = vld [vmem:[%s1 + $0x40] sm:$0xff]
  %v21 = vld [vmem:[%s1 + $0x48] sm:$0xff]
  %v22 = vld [vmem:[%s1 + $0x50] sm:$0xff]
  %v23 = vld [vmem:[%s1 + $0x58] sm:$0xff]
  %v24 = vld [vmem:[%s1 + $0x60] sm:$0xff]
  %v25 = vld [vmem:[%s1 + $0x68] sm:$0xff]
  %v26 = vld [vmem:[%s1 + $0x70] sm:$0xff]
  %v27 = vld [vmem:[%s1 + $0x78] sm:$0xff]
  %v28 = vld [vmem:[%s1 + $0x80] sm:$0xff]
  %v29 = vld [vmem:[%s1 + $0x88] sm:$0xff]
  %v30 = vld [vmem:[%s1 + $0x90] sm:$0xff]
  %v31 = vld [vmem:[%s1 + $0x98] sm:$0xff]
  %v32 = vld [vmem:[%s1 + $0xa0] sm:$0xff]
  %v33 = vld [vmem:[%s1 + $0xa8] sm:$0xff]
  %v34 = vld [vmem:[%s1 + $0xb0] sm:$0xff]
  %v35 = vld [vmem:[%s1 + $0xb8] sm:$0xff]
  %v36 = vld [vmem:[%s1 + $0xc0] sm:$0xff]
  %v37 = vld [vmem:[%s1 + $0xc8] sm:$0xff]
  %v38 = vld [vmem:[%s1 + $0xd0] sm:$0xff]
  %v39 = vld [vmem:[%s1 + $0xd8] sm:$0xff]
  %v40 = vld [vmem:[%s1 + $0xe0] sm:$0xff]
  %v41 = vld [vmem:[%s1 + $0xe8] sm:$0xff]
  %v42 = vld [vmem:[%s1 + $0xf0] sm:$0xff]
  %v43 = vld [vmem:[%s1 + $0xf8] sm:$0xff]
  %v44 = vld [vmem:[%s0] sm:$0xff]
  %v45 = vld [vmem:[%s0 + $0x8] sm:$0xff]
  %v46 = vld [vmem:[%s0 + $0x10] sm:$0xff]
  %v47 = vld [vmem:[%s0 + $0x18] sm:$0xff]
  %v80 = vunpack.c.l.b16 %v12
  %v81 = vunpack.c.h.b16 %v12
  %v82 = vunpack.c.l.b16 %v13
  %v83 = vunpack.c.h.b16 %v13
  %v84 = vunpack.c.l.b16 %v14
  %v85 = vunpack.c.h.b16 %v14
  %v86 = vunpack.c.l.b16 %v15
  %v87 = vunpack.c.h.b16 %v15
  %v88 = vunpack.c.l.b16 %v16
  %v89 = vunpack.c.h.b16 %v16
  %v90 = vunpack.c.l.b16 %v17
  %v91 = vunpack.c.h.b16 %v17
  %v92 = vunpack.c.l.b16 %v18
  %v93 = vunpack.c.h.b16 %v18
  %v94 = vunpack.c.l.b16 %v19
  %v95 = vunpack.c.h.b16 %v19
  %v96 = vunpack.c.l.b16 %v20
  %v97 = vunpack.c.h.b16 %v20
  %v98 = vunpack.c.l.b16 %v21
  %v99 = vunpack.c.h.b16 %v21
  %v100 = vunpack.c.l.b16 %v22
  %v101 = vunpack.c.h.b16 %v22
  %v102 = vunpack.c.l.b16 %v23
  %v103 = vunpack.c.h.b16 %v23
  %v104 = vunpack.c.l.b16 %v24
  %v105 = vunpack.c.h.b16 %v24
  %v106 = vunpack.c.l.b16 %v25
  %v107 = vunpack.c.h.b16 %v25
  %v108 = vunpack.c.l.b16 %v26
  %v109 = vunpack.c.h.b16 %v26
  %v110 = vunpack.c.l.b16 %v27
  %v111 = vunpack.c.h.b16 %v27
  %v112 = vunpack.c.l.b16 %v28
  %v113 = vunpack.c.h.b16 %v28
  %v114 = vunpack.c.l.b16 %v29
  %v115 = vunpack.c.h.b16 %v29
  %v116 = vunpack.c.l.b16 %v30
  %v117 = vunpack.c.h.b16 %v30
  %v118 = vunpack.c.l.b16 %v31
  %v119 = vunpack.c.h.b16 %v31
  %v120 = vunpack.c.l.b16 %v32
  %v121 = vunpack.c.h.b16 %v32
  %v122 = vunpack.c.l.b16 %v33
  %v123 = vunpack.c.h.b16 %v33
  %v124 = vunpack.c.l.b16 %v34
  %v125 = vunpack.c.h.b16 %v34
  %v126 = vunpack.c.l.b16 %v35
  %v127 = vunpack.c.h.b16 %v35
  %v128 = vunpack.c.l.b16 %v36
  %v129 = vunpack.c.h.b16 %v36
  %v130 = vunpack.c.l.b16 %v37
  %v131 = vunpack.c.h.b16 %v37
  %v132 = vunpack.c.l.b16 %v38
  %v133 = vunpack.c.h.b16 %v38
  %v134 = vunpack.c.l.b16 %v39
  %v135 = vunpack.c.h.b16 %v39
  %v136 = vunpack.c.l.b16 %v40
  %v137 = vunpack.c.h.b16 %v40
  %v138 = vunpack.c.l.b16 %v41
  %v139 = vunpack.c.h.b16 %v41
  %v140 = vunpack.c.l.b16 %v42
  %v141 = vunpack.c.h.b16 %v42
  %v142 = vunpack.c.l.b16 %v43
  %v143 = vunpack.c.h.b16 %v43
  %v144 = vpack.c.b16 %v112, %v80
  %v145 = vpack.c.b16 %v113, %v81
  %v146 = vpack.c.b16 %v114, %v82
  %v147 = vpack.c.b16 %v115, %v83
  %v148 = vpack.c.b16 %v116, %v84
  %v149 = vpack.c.b16 %v117, %v85
  %v150 = vpack.c.b16 %v118, %v86
  %v151 = vpack.c.b16 %v119, %v87
  %v152 = vpack.c.b16 %v120, %v88
  %v153 = vpack.c.b16 %v121, %v89
  %v154 = vpack.c.b16 %v122, %v90
  %v155 = vpack.c.b16 %v123, %v91
  %v156 = vpack.c.b16 %v124, %v92
  %v157 = vpack.c.b16 %v125, %v93
  %v158 = vpack.c.b16 %v126, %v94
  %v159 = vpack.c.b16 %v127, %v95
  %v160 = vpack.c.b16 %v128, %v96
  %v161 = vpack.c.b16 %v129, %v97
  %v162 = vpack.c.b16 %v130, %v98
  %v163 = vpack.c.b16 %v131, %v99
  %v164 = vpack.c.b16 %v132, %v100
  %v165 = vpack.c.b16 %v133, %v101
  %v166 = vpack.c.b16 %v134, %v102
  %v167 = vpack.c.b16 %v135, %v103
  %v168 = vpack.c.b16 %v136, %v104
  %v169 = vpack.c.b16 %v137, %v105
  %v170 = vpack.c.b16 %v138, %v106
  %v171 = vpack.c.b16 %v139, %v107
  %v172 = vpack.c.b16 %v140, %v108
  %v173 = vpack.c.b16 %v141, %v109
  %v174 = vpack.c.b16 %v142, %v110
  %v175 = vpack.c.b16 %v143, %v111
  %209 = vst [vmem:[#allocation1] ss:$9 sm:$0xff] %v44
  %v210 = vld [vmem:[#allocation1] sm:$0xff]
  %v211 = vld [vmem:[#allocation1 + $0x9] sm:$0xff]
  %v212 = vld [vmem:[#allocation1 + $0x12] sm:$0xff]
  %v213 = vld [vmem:[#allocation1 + $0x1b] sm:$0xff]
  %v214 = vld [vmem:[#allocation1 + $0x24] sm:$0xff]
  %v215 = vld [vmem:[#allocation1 + $0x2d] sm:$0xff]
  %v216 = vld [vmem:[#allocation1 + $0x36] sm:$0xff]
  %v217 = vld [vmem:[#allocation1 + $0x3f] sm:$0xff]
  %219 = vst [vmem:[#allocation1] ss:$9 sm:$0xff] %v45
  %v220 = vld [vmem:[#allocation1] sm:$0xff]
  %v221 = vld [vmem:[#allocation1 + $0x9] sm:$0xff]
  %v222 = vld [vmem:[#allocation1 + $0x12] sm:$0xff]
  %v223 = vld [vmem:[#allocation1 + $0x1b] sm:$0xff]
  %v224 = vld [vmem:[#allocation1 + $0x24] sm:$0xff]
  %v225 = vld [vmem:[#allocation1 + $0x2d] sm:$0xff]
  %v226 = vld [vmem:[#allocation1 + $0x36] sm:$0xff]
  %v227 = vld [vmem:[#allocation1 + $0x3f] sm:$0xff]
  %229 = vst [vmem:[#allocation1] ss:$9 sm:$0xff] %v46
  %v230 = vld [vmem:[#allocation1] sm:$0xff]
  %v231 = vld [vmem:[#allocation1 + $0x9] sm:$0xff]
  %v232 = vld [vmem:[#allocation1 + $0x12] sm:$0xff]
  %v233 = vld [vmem:[#allocation1 + $0x1b] sm:$0xff]
  %v234 = vld [vmem:[#allocation1 + $0x24] sm:$0xff]
  %v235 = vld [vmem:[#allocation1 + $0x2d] sm:$0xff]
  %v236 = vld [vmem:[#allocation1 + $0x36] sm:$0xff]
  %v237 = vld [vmem:[#allocation1 + $0x3f] sm:$0xff]
  %239 = vst [vmem:[#allocation1] ss:$9 sm:$0xff] %v47
  %v240 = vld [vmem:[#allocation1] sm:$0xff]
  %v241 = vld [vmem:[#allocation1 + $0x9] sm:$0xff]
  %v242 = vld [vmem:[#allocation1 + $0x12] sm:$0xff]
  %v243 = vld [vmem:[#allocation1 + $0x1b] sm:$0xff]
  %v244 = vld [vmem:[#allocation1 + $0x24] sm:$0xff]
  %v245 = vld [vmem:[#allocation1 + $0x2d] sm:$0xff]
  %v246 = vld [vmem:[#allocation1 + $0x36] sm:$0xff]
  %v247 = vld [vmem:[#allocation1 + $0x3f] sm:$0xff]
  %280 = vmatpush.bf16.xpose.msra.mxu0 0
  %281 = vmatpush.bf16.xpose.msra.mxu0 0
  %282 = vmatpush.bf16.xpose.msra.mxu0 0
  %283 = vmatpush.bf16.xpose.msra.mxu0 0
  %284 = vmatpush.bf16.xpose.msra.mxu0 0
  %285 = vmatpush.bf16.xpose.msra.mxu0 0
  %286 = vmatpush.bf16.xpose.msra.mxu0 0
  %287 = vmatpush.bf16.xpose.msra.mxu0 %v210
  %288 = vmatmul.bf16.gmra.mxu0 %v144
  %v289 = vpop.f32.mrf.mxu0
  %v290 = vadd.f32 0.0, %v289
  %v291 = vpop.f32.mrf.mxu0
  %v292 = vadd.f32 0.0, %v291
  %293 = vdwg.mxu0
  %294 = vmatpush.bf16.xpose.msra.mxu0 0
  %295 = vmatpush.bf16.xpose.msra.mxu0 0
  %296 = vmatpush.bf16.xpose.msra.mxu0 0
  %297 = vmatpush.bf16.xpose.msra.mxu0 0
  %298 = vmatpush.bf16.xpose.msra.mxu0 0
  %299 = vmatpush.bf16.xpose.msra.mxu0 0
  %300 = vmatpush.bf16.xpose.msra.mxu0 0
  %301 = vmatpush.bf16.xpose.msra.mxu0 %v211
  %302 = vmatmul.bf16.gmra.mxu0 %v145
  %v303 = vpop.f32.mrf.mxu0
  %v304 = vadd.f32 %v290, %v303
  %v305 = vpop.f32.mrf.mxu0
  %v306 = vadd.f32 %v292, %v305
  %307 = vdwg.mxu0
  %308 = vmatpush.bf16.xpose.msra.mxu0 0
  %309 = vmatpush.bf16.xpose.msra.mxu0 0
  %310 = vmatpush.bf16.xpose.msra.mxu0 0
  %311 = vmatpush.bf16.xpose.msra.mxu0 0
  %312 = vmatpush.bf16.xpose.msra.mxu0 0
  %313 = vmatpush.bf16.xpose.msra.mxu0 0
  %314 = vmatpush.bf16.xpose.msra.mxu0 0
  %315 = vmatpush.bf16.xpose.msra.mxu0 %v212
  %316 = vmatmul.bf16.gmra.mxu0 %v146
  %v317 = vpop.f32.mrf.mxu0
  %v318 = vadd.f32 %v304, %v317
  %v319 = vpop.f32.mrf.mxu0
  %v320 = vadd.f32 %v306, %v319
  %321 = vdwg.mxu0
  %322 = vmatpush.bf16.xpose.msra.mxu0 0
  %323 = vmatpush.bf16.xpose.msra.mxu0 0
  %324 = vmatpush.bf16.xpose.msra.mxu0 0
  %325 = vmatpush.bf16.xpose.msra.mxu0 0
  %326 = vmatpush.bf16.xpose.msra.mxu0 0
  %327 = vmatpush.bf16.xpose.msra.mxu0 0
  %328 = vmatpush.bf16.xpose.msra.mxu0 0
  %329 = vmatpush.bf16.xpose.msra.mxu0 %v213
  %330 = vmatmul.bf16.gmra.mxu0 %v147
  %v331 = vpop.f32.mrf.mxu0
  %v332 = vadd.f32 %v318, %v331
  %v333 = vpop.f32.mrf.mxu0
  %v334 = vadd.f32 %v320, %v333
  %335 = vdwg.mxu0
  %336 = vmatpush.bf16.xpose.msra.mxu0 0
  %337 = vmatpush.bf16.xpose.msra.mxu0 0
  %338 = vmatpush.bf16.xpose.msra.mxu0 0
  %339 = vmatpush.bf16.xpose.msra.mxu0 0
  %340 = vmatpush.bf16.xpose.msra.mxu0 0
  %341 = vmatpush.bf16.xpose.msra.mxu0 0
  %342 = vmatpush.bf16.xpose.msra.mxu0 0
  %343 = vmatpush.bf16.xpose.msra.mxu0 %v214
  %344 = vmatmul.bf16.gmra.mxu0 %v148
  %v345 = vpop.f32.mrf.mxu0
  %v346 = vadd.f32 %v332, %v345
  %v347 = vpop.f32.mrf.mxu0
  %v348 = vadd.f32 %v334, %v347
  %349 = vdwg.mxu0
  %350 = vmatpush.bf16.xpose.msra.mxu0 0
  %351 = vmatpush.bf16.xpose.msra.mxu0 0
  %352 = vmatpush.bf16.xpose.msra.mxu0 0
  %353 = vmatpush.bf16.xpose.msra.mxu0 0
  %354 = vmatpush.bf16.xpose.msra.mxu0 0
  %355 = vmatpush.bf16.xpose.msra.mxu0 0
  %356 = vmatpush.bf16.xpose.msra.mxu0 0
  %357 = vmatpush.bf16.xpose.msra.mxu0 %v215
  %358 = vmatmul.bf16.gmra.mxu0 %v149
  %v359 = vpop.f32.mrf.mxu0
  %v360 = vadd.f32 %v346, %v359
  %v361 = vpop.f32.mrf.mxu0
  %v362 = vadd.f32 %v348, %v361
  %363 = vdwg.mxu0
  %364 = vmatpush.bf16.xpose.msra.mxu0 0
  %365 = vmatpush.bf16.xpose.msra.mxu0 0
  %366 = vmatpush.bf16.xpose.msra.mxu0 0
  %367 = vmatpush.bf16.xpose.msra.mxu0 0
  %368 = vmatpush.bf16.xpose.msra.mxu0 0
  %369 = vmatpush.bf16.xpose.msra.mxu0 0
  %370 = vmatpush.bf16.xpose.msra.mxu0 0
  %371 = vmatpush.bf16.xpose.msra.mxu0 %v216
  %372 = vmatmul.bf16.gmra.mxu0 %v150
  %v373 = vpop.f32.mrf.mxu0
  %v374 = vadd.f32 %v360, %v373
  %v375 = vpop.f32.mrf.mxu0
  %v376 = vadd.f32 %v362, %v375
  %377 = vdwg.mxu0
  %378 = vmatpush.bf16.xpose.msra.mxu0 0
  %379 = vmatpush.bf16.xpose.msra.mxu0 0
  %380 = vmatpush.bf16.xpose.msra.mxu0 0
  %381 = vmatpush.bf16.xpose.msra.mxu0 0
  %382 = vmatpush.bf16.xpose.msra.mxu0 0
  %383 = vmatpush.bf16.xpose.msra.mxu0 0
  %384 = vmatpush.bf16.xpose.msra.mxu0 0
  %385 = vmatpush.bf16.xpose.msra.mxu0 %v217
  %386 = vmatmul.bf16.gmra.mxu0 %v151
  %v387 = vpop.f32.mrf.mxu0
  %v388 = vadd.f32 %v374, %v387
  %v389 = vpop.f32.mrf.mxu0
  %v390 = vadd.f32 %v376, %v389
  %391 = vdwg.mxu0
  %392 = vmatpush.bf16.xpose.msra.mxu0 0
  %393 = vmatpush.bf16.xpose.msra.mxu0 0
  %394 = vmatpush.bf16.xpose.msra.mxu0 0
  %395 = vmatpush.bf16.xpose.msra.mxu0 0
  %396 = vmatpush.bf16.xpose.msra.mxu0 0
  %397 = vmatpush.bf16.xpose.msra.mxu0 0
  %398 = vmatpush.bf16.xpose.msra.mxu0 0
  %399 = vmatpush.bf16.xpose.msra.mxu0 %v220
  %400 = vmatmul.bf16.gmra.mxu0 %v152
  %v401 = vpop.f32.mrf.mxu0
  %v402 = vadd.f32 %v388, %v401
  %v403 = vpop.f32.mrf.mxu0
  %v404 = vadd.f32 %v390, %v403
  %405 = vdwg.mxu0
  %406 = vmatpush.bf16.xpose.msra.mxu0 0
  %407 = vmatpush.bf16.xpose.msra.mxu0 0
  %408 = vmatpush.bf16.xpose.msra.mxu0 0
  %409 = vmatpush.bf16.xpose.msra.mxu0 0
  %410 = vmatpush.bf16.xpose.msra.mxu0 0
  %411 = vmatpush.bf16.xpose.msra.mxu0 0
  %412 = vmatpush.bf16.xpose.msra.mxu0 0
  %413 = vmatpush.bf16.xpose.msra.mxu0 %v221
  %414 = vmatmul.bf16.gmra.mxu0 %v153
  %v415 = vpop.f32.mrf.mxu0
  %v416 = vadd.f32 %v402, %v415
  %v417 = vpop.f32.mrf.mxu0
  %v418 = vadd.f32 %v404, %v417
  %419 = vdwg.mxu0
  %420 = vmatpush.bf16.xpose.msra.mxu0 0
  %421 = vmatpush.bf16.xpose.msra.mxu0 0
  %422 = vmatpush.bf16.xpose.msra.mxu0 0
  %423 = vmatpush.bf16.xpose.msra.mxu0 0
  %424 = vmatpush.bf16.xpose.msra.mxu0 0
  %425 = vmatpush.bf16.xpose.msra.mxu0 0
  %426 = vmatpush.bf16.xpose.msra.mxu0 0
  %427 = vmatpush.bf16.xpose.msra.mxu0 %v222
  %428 = vmatmul.bf16.gmra.mxu0 %v154
  %v429 = vpop.f32.mrf.mxu0
  %v430 = vadd.f32 %v416, %v429
  %v431 = vpop.f32.mrf.mxu0
  %v432 = vadd.f32 %v418, %v431
  %433 = vdwg.mxu0
  %434 = vmatpush.bf16.xpose.msra.mxu0 0
  %435 = vmatpush.bf16.xpose.msra.mxu0 0
  %436 = vmatpush.bf16.xpose.msra.mxu0 0
  %437 = vmatpush.bf16.xpose.msra.mxu0 0
  %438 = vmatpush.bf16.xpose.msra.mxu0 0
  %439 = vmatpush.bf16.xpose.msra.mxu0 0
  %440 = vmatpush.bf16.xpose.msra.mxu0 0
  %441 = vmatpush.bf16.xpose.msra.mxu0 %v223
  %442 = vmatmul.bf16.gmra.mxu0 %v155
  %v443 = vpop.f32.mrf.mxu0
  %v444 = vadd.f32 %v430, %v443
  %v445 = vpop.f32.mrf.mxu0
  %v446 = vadd.f32 %v432, %v445
  %447 = vdwg.mxu0
  %448 = vmatpush.bf16.xpose.msra.mxu0 0
  %449 = vmatpush.bf16.xpose.msra.mxu0 0
  %450 = vmatpush.bf16.xpose.msra.mxu0 0
  %451 = vmatpush.bf16.xpose.msra.mxu0 0
  %452 = vmatpush.bf16.xpose.msra.mxu0 0
  %453 = vmatpush.bf16.xpose.msra.mxu0 0
  %454 = vmatpush.bf16.xpose.msra.mxu0 0
  %455 = vmatpush.bf16.xpose.msra.mxu0 %v224
  %456 = vmatmul.bf16.gmra.mxu0 %v156
  %v457 = vpop.f32.mrf.mxu0
  %v458 = vadd.f32 %v444, %v457
  %v459 = vpop.f32.mrf.mxu0
  %v460 = vadd.f32 %v446, %v459
  %461 = vdwg.mxu0
  %462 = vmatpush.bf16.xpose.msra.mxu0 0
  %463 = vmatpush.bf16.xpose.msra.mxu0 0
  %464 = vmatpush.bf16.xpose.msra.mxu0 0
  %465 = vmatpush.bf16.xpose.msra.mxu0 0
  %466 = vmatpush.bf16.xpose.msra.mxu0 0
  %467 = vmatpush.bf16.xpose.msra.mxu0 0
  %468 = vmatpush.bf16.xpose.msra.mxu0 0
  %469 = vmatpush.bf16.xpose.msra.mxu0 %v225
  %470 = vmatmul.bf16.gmra.mxu0 %v157
  %v471 = vpop.f32.mrf.mxu0
  %v472 = vadd.f32 %v458, %v471
  %v473 = vpop.f32.mrf.mxu0
  %v474 = vadd.f32 %v460, %v473
  %475 = vdwg.mxu0
  %476 = vmatpush.bf16.xpose.msra.mxu0 0
  %477 = vmatpush.bf16.xpose.msra.mxu0 0
  %478 = vmatpush.bf16.xpose.msra.mxu0 0
  %479 = vmatpush.bf16.xpose.msra.mxu0 0
  %480 = vmatpush.bf16.xpose.msra.mxu0 0
  %481 = vmatpush.bf16.xpose.msra.mxu0 0
  %482 = vmatpush.bf16.xpose.msra.mxu0 0
  %483 = vmatpush.bf16.xpose.msra.mxu0 %v226
  %484 = vmatmul.bf16.gmra.mxu0 %v158
  %v485 = vpop.f32.mrf.mxu0
  %v486 = vadd.f32 %v472, %v485
  %v487 = vpop.f32.mrf.mxu0
  %v488 = vadd.f32 %v474, %v487
  %489 = vdwg.mxu0
  %490 = vmatpush.bf16.xpose.msra.mxu0 0
  %491 = vmatpush.bf16.xpose.msra.mxu0 0
  %492 = vmatpush.bf16.xpose.msra.mxu0 0
  %493 = vmatpush.bf16.xpose.msra.mxu0 0
  %494 = vmatpush.bf16.xpose.msra.mxu0 0
  %495 = vmatpush.bf16.xpose.msra.mxu0 0
  %496 = vmatpush.bf16.xpose.msra.mxu0 0
  %497 = vmatpush.bf16.xpose.msra.mxu0 %v227
  %498 = vmatmul.bf16.gmra.mxu0 %v159
  %v499 = vpop.f32.mrf.mxu0
  %v500 = vadd.f32 %v486, %v499
  %v501 = vpop.f32.mrf.mxu0
  %v502 = vadd.f32 %v488, %v501
  %503 = vdwg.mxu0
  %504 = vmatpush.bf16.xpose.msra.mxu0 0
  %505 = vmatpush.bf16.xpose.msra.mxu0 0
  %506 = vmatpush.bf16.xpose.msra.mxu0 0
  %507 = vmatpush.bf16.xpose.msra.mxu0 0
  %508 = vmatpush.bf16.xpose.msra.mxu0 0
  %509 = vmatpush.bf16.xpose.msra.mxu0 0
  %510 = vmatpush.bf16.xpose.msra.mxu0 0
  %511 = vmatpush.bf16.xpose.msra.mxu0 %v230
  %512 = vmatmul.bf16.gmra.mxu0 %v160
  %v513 = vpop.f32.mrf.mxu0
  %v514 = vadd.f32 %v500, %v513
  %v515 = vpop.f32.mrf.mxu0
  %v516 = vadd.f32 %v502, %v515
  %517 = vdwg.mxu0
  %518 = vmatpush.bf16.xpose.msra.mxu0 0
  %519 = vmatpush.bf16.xpose.msra.mxu0 0
  %520 = vmatpush.bf16.xpose.msra.mxu0 0
  %521 = vmatpush.bf16.xpose.msra.mxu0 0
  %522 = vmatpush.bf16.xpose.msra.mxu0 0
  %523 = vmatpush.bf16.xpose.msra.mxu0 0
  %524 = vmatpush.bf16.xpose.msra.mxu0 0
  %525 = vmatpush.bf16.xpose.msra.mxu0 %v231
  %526 = vmatmul.bf16.gmra.mxu0 %v161
  %v527 = vpop.f32.mrf.mxu0
  %v528 = vadd.f32 %v514, %v527
  %v529 = vpop.f32.mrf.mxu0
  %v530 = vadd.f32 %v516, %v529
  %531 = vdwg.mxu0
  %532 = vmatpush.bf16.xpose.msra.mxu0 0
  %533 = vmatpush.bf16.xpose.msra.mxu0 0
  %534 = vmatpush.bf16.xpose.msra.mxu0 0
  %535 = vmatpush.bf16.xpose.msra.mxu0 0
  %536 = vmatpush.bf16.xpose.msra.mxu0 0
  %537 = vmatpush.bf16.xpose.msra.mxu0 0
  %538 = vmatpush.bf16.xpose.msra.mxu0 0
  %539 = vmatpush.bf16.xpose.msra.mxu0 %v232
  %540 = vmatmul.bf16.gmra.mxu0 %v162
  %v541 = vpop.f32.mrf.mxu0
  %v542 = vadd.f32 %v528, %v541
  %v543 = vpop.f32.mrf.mxu0
  %v544 = vadd.f32 %v530, %v543
  %545 = vdwg.mxu0
  %546 = vmatpush.bf16.xpose.msra.mxu0 0
  %547 = vmatpush.bf16.xpose.msra.mxu0 0
  %548 = vmatpush.bf16.xpose.msra.mxu0 0
  %549 = vmatpush.bf16.xpose.msra.mxu0 0
  %550 = vmatpush.bf16.xpose.msra.mxu0 0
  %551 = vmatpush.bf16.xpose.msra.mxu0 0
  %552 = vmatpush.bf16.xpose.msra.mxu0 0
  %553 = vmatpush.bf16.xpose.msra.mxu0 %v233
  %554 = vmatmul.bf16.gmra.mxu0 %v163
  %v555 = vpop.f32.mrf.mxu0
  %v556 = vadd.f32 %v542, %v555
  %v557 = vpop.f32.mrf.mxu0
  %v558 = vadd.f32 %v544, %v557
  %559 = vdwg.mxu0
  %560 = vmatpush.bf16.xpose.msra.mxu0 0
  %561 = vmatpush.bf16.xpose.msra.mxu0 0
  %562 = vmatpush.bf16.xpose.msra.mxu0 0
  %563 = vmatpush.bf16.xpose.msra.mxu0 0
  %564 = vmatpush.bf16.xpose.msra.mxu0 0
  %565 = vmatpush.bf16.xpose.msra.mxu0 0
  %566 = vmatpush.bf16.xpose.msra.mxu0 0
  %567 = vmatpush.bf16.xpose.msra.mxu0 %v234
  %568 = vmatmul.bf16.gmra.mxu0 %v164
  %v569 = vpop.f32.mrf.mxu0
  %v570 = vadd.f32 %v556, %v569
  %v571 = vpop.f32.mrf.mxu0
  %v572 = vadd.f32 %v558, %v571
  %573 = vdwg.mxu0
  %574 = vmatpush.bf16.xpose.msra.mxu0 0
  %575 = vmatpush.bf16.xpose.msra.mxu0 0
  %576 = vmatpush.bf16.xpose.msra.mxu0 0
  %577 = vmatpush.bf16.xpose.msra.mxu0 0
  %578 = vmatpush.bf16.xpose.msra.mxu0 0
  %579 = vmatpush.bf16.xpose.msra.mxu0 0
  %580 = vmatpush.bf16.xpose.msra.mxu0 0
  %581 = vmatpush.bf16.xpose.msra.mxu0 %v235
  %582 = vmatmul.bf16.gmra.mxu0 %v165
  %v583 = vpop.f32.mrf.mxu0
  %v584 = vadd.f32 %v570, %v583
  %v585 = vpop.f32.mrf.mxu0
  %v586 = vadd.f32 %v572, %v585
  %587 = vdwg.mxu0
  %588 = vmatpush.bf16.xpose.msra.mxu0 0
  %589 = vmatpush.bf16.xpose.msra.mxu0 0
  %590 = vmatpush.bf16.xpose.msra.mxu0 0
  %591 = vmatpush.bf16.xpose.msra.mxu0 0
  %592 = vmatpush.bf16.xpose.msra.mxu0 0
  %593 = vmatpush.bf16.xpose.msra.mxu0 0
  %594 = vmatpush.bf16.xpose.msra.mxu0 0
  %595 = vmatpush.bf16.xpose.msra.mxu0 %v236
  %596 = vmatmul.bf16.gmra.mxu0 %v166
  %v597 = vpop.f32.mrf.mxu0
  %v598 = vadd.f32 %v584, %v597
  %v599 = vpop.f32.mrf.mxu0
  %v600 = vadd.f32 %v586, %v599
  %601 = vdwg.mxu0
  %602 = vmatpush.bf16.xpose.msra.mxu0 0
  %603 = vmatpush.bf16.xpose.msra.mxu0 0
  %604 = vmatpush.bf16.xpose.msra.mxu0 0
  %605 = vmatpush.bf16.xpose.msra.mxu0 0
  %606 = vmatpush.bf16.xpose.msra.mxu0 0
  %607 = vmatpush.bf16.xpose.msra.mxu0 0
  %608 = vmatpush.bf16.xpose.msra.mxu0 0
  %609 = vmatpush.bf16.xpose.msra.mxu0 %v237
  %610 = vmatmul.bf16.gmra.mxu0 %v167
  %v611 = vpop.f32.mrf.mxu0
  %v612 = vadd.f32 %v598, %v611
  %v613 = vpop.f32.mrf.mxu0
  %v614 = vadd.f32 %v600, %v613
  %615 = vdwg.mxu0
  %616 = vmatpush.bf16.xpose.msra.mxu0 0
  %617 = vmatpush.bf16.xpose.msra.mxu0 0
  %618 = vmatpush.bf16.xpose.msra.mxu0 0
  %619 = vmatpush.bf16.xpose.msra.mxu0 0
  %620 = vmatpush.bf16.xpose.msra.mxu0 0
  %621 = vmatpush.bf16.xpose.msra.mxu0 0
  %622 = vmatpush.bf16.xpose.msra.mxu0 0
  %623 = vmatpush.bf16.xpose.msra.mxu0 %v240
  %624 = vmatmul.bf16.gmra.mxu0 %v168
  %v625 = vpop.f32.mrf.mxu0
  %v626 = vadd.f32 %v612, %v625
  %v627 = vpop.f32.mrf.mxu0
  %v628 = vadd.f32 %v614, %v627
  %629 = vdwg.mxu0
  %630 = vmatpush.bf16.xpose.msra.mxu0 0
  %631 = vmatpush.bf16.xpose.msra.mxu0 0
  %632 = vmatpush.bf16.xpose.msra.mxu0 0
  %633 = vmatpush.bf16.xpose.msra.mxu0 0
  %634 = vmatpush.bf16.xpose.msra.mxu0 0
  %635 = vmatpush.bf16.xpose.msra.mxu0 0
  %636 = vmatpush.bf16.xpose.msra.mxu0 0
  %637 = vmatpush.bf16.xpose.msra.mxu0 %v241
  %638 = vmatmul.bf16.gmra.mxu0 %v169
  %v639 = vpop.f32.mrf.mxu0
  %v640 = vadd.f32 %v626, %v639
  %v641 = vpop.f32.mrf.mxu0
  %v642 = vadd.f32 %v628, %v641
  %643 = vdwg.mxu0
  %644 = vmatpush.bf16.xpose.msra.mxu0 0
  %645 = vmatpush.bf16.xpose.msra.mxu0 0
  %646 = vmatpush.bf16.xpose.msra.mxu0 0
  %647 = vmatpush.bf16.xpose.msra.mxu0 0
  %648 = vmatpush.bf16.xpose.msra.mxu0 0
  %649 = vmatpush.bf16.xpose.msra.mxu0 0
  %650 = vmatpush.bf16.xpose.msra.mxu0 0
  %651 = vmatpush.bf16.xpose.msra.mxu0 %v242
  %652 = vmatmul.bf16.gmra.mxu0 %v170
  %v653 = vpop.f32.mrf.mxu0
  %v654 = vadd.f32 %v640, %v653
  %v655 = vpop.f32.mrf.mxu0
  %v656 = vadd.f32 %v642, %v655
  %657 = vdwg.mxu0
  %658 = vmatpush.bf16.xpose.msra.mxu0 0
  %659 = vmatpush.bf16.xpose.msra.mxu0 0
  %660 = vmatpush.bf16.xpose.msra.mxu0 0
  %661 = vmatpush.bf16.xpose.msra.mxu0 0
  %662 = vmatpush.bf16.xpose.msra.mxu0 0
  %663 = vmatpush.bf16.xpose.msra.mxu0 0
  %664 = vmatpush.bf16.xpose.msra.mxu0 0
  %665 = vmatpush.bf16.xpose.msra.mxu0 %v243
  %666 = vmatmul.bf16.gmra.mxu0 %v171
  %v667 = vpop.f32.mrf.mxu0
  %v668 = vadd.f32 %v654, %v667
  %v669 = vpop.f32.mrf.mxu0
  %v670 = vadd.f32 %v656, %v669
  %671 = vdwg.mxu0
  %672 = vmatpush.bf16.xpose.msra.mxu0 0
  %673 = vmatpush.bf16.xpose.msra.mxu0 0
  %674 = vmatpush.bf16.xpose.msra.mxu0 0
  %675 = vmatpush.bf16.xpose.msra.mxu0 0
  %676 = vmatpush.bf16.xpose.msra.mxu0 0
  %677 = vmatpush.bf16.xpose.msra.mxu0 0
  %678 = vmatpush.bf16.xpose.msra.mxu0 0
  %679 = vmatpush.bf16.xpose.msra.mxu0 %v244
  %680 = vmatmul.bf16.gmra.mxu0 %v172
  %v681 = vpop.f32.mrf.mxu0
  %v682 = vadd.f32 %v668, %v681
  %v683 = vpop.f32.mrf.mxu0
  %v684 = vadd.f32 %v670, %v683
  %685 = vdwg.mxu0
  %686 = vmatpush.bf16.xpose.msra.mxu0 0
  %687 = vmatpush.bf16.xpose.msra.mxu0 0
  %688 = vmatpush.bf16.xpose.msra.mxu0 0
  %689 = vmatpush.bf16.xpose.msra.mxu0 0
  %690 = vmatpush.bf16.xpose.msra.mxu0 0
  %691 = vmatpush.bf16.xpose.msra.mxu0 0
  %692 = vmatpush.bf16.xpose.msra.mxu0 0
  %693 = vmatpush.bf16.xpose.msra.mxu0 %v245
  %694 = vmatmul.bf16.gmra.mxu0 %v173
  %v695 = vpop.f32.mrf.mxu0
  %v696 = vadd.f32 %v682, %v695
  %v697 = vpop.f32.mrf.mxu0
  %v698 = vadd.f32 %v684, %v697
  %699 = vdwg.mxu0
  %700 = vmatpush.bf16.xpose.msra.mxu0 0
  %701 = vmatpush.bf16.xpose.msra.mxu0 0
  %702 = vmatpush.bf16.xpose.msra.mxu0 0
  %703 = vmatpush.bf16.xpose.msra.mxu0 0
  %704 = vmatpush.bf16.xpose.msra.mxu0 0
  %705 = vmatpush.bf16.xpose.msra.mxu0 0
  %706 = vmatpush.bf16.xpose.msra.mxu0 0
  %707 = vmatpush.bf16.xpose.msra.mxu0 %v246
  %708 = vmatmul.bf16.gmra.mxu0 %v174
  %v709 = vpop.f32.mrf.mxu0
  %v710 = vadd.f32 %v696, %v709
  %v711 = vpop.f32.mrf.mxu0
  %v712 = vadd.f32 %v698, %v711
  %713 = vdwg.mxu0
  %714 = vmatpush.bf16.xpose.msra.mxu0 0
  %715 = vmatpush.bf16.xpose.msra.mxu0 0
  %716 = vmatpush.bf16.xpose.msra.mxu0 0
  %717 = vmatpush.bf16.xpose.msra.mxu0 0
  %718 = vmatpush.bf16.xpose.msra.mxu0 0
  %719 = vmatpush.bf16.xpose.msra.mxu0 0
  %720 = vmatpush.bf16.xpose.msra.mxu0 0
  %721 = vmatpush.bf16.xpose.msra.mxu0 %v247
  %722 = vmatmul.bf16.gmra.mxu0 %v175
  %v723 = vpop.f32.mrf.mxu0
  %v724 = vadd.f32 %v710, %v723
  %v725 = vpop.f32.mrf.mxu0
  %v726 = vadd.f32 %v712, %v725
  %727 = vdwg.mxu0
  %729 = vset.pattern.permute.xlu0 0
  %730 = vperm.xlu0 %729, %v724
  %v731 = vpop.permute.xlu0 %730
  %734 = vset.pattern.permute.xlu0 0
  %735 = vperm.xlu0 %734, %v726
  %v736 = vpop.permute.xlu0 %735
  %738 = vst [vmem:[%s2] sm:$0xff] %v731
  %739 = vst [vmem:[%s2 + $0x8] sm:$0xff] %v731
  %740 = vst [vmem:[%s2 + $0x10] sm:$0xff] %v736
  %741 = vst [vmem:[%s2 + $0x18] sm:$0xff] %v736
  %742 = vset.pattern.permute.xlu0 1
  %743 = vperm.xlu0 %742, %v724
  %v744 = vpop.permute.xlu0 %743
  %746 = vset.pattern.permute.xlu0 1
  %747 = vperm.xlu0 %746, %v726
  %v748 = vpop.permute.xlu0 %747
  %s750 = scalar_lea.vmem %s2, 32
  %751 = vst [vmem:[%s750] sm:$0xff] %v744
  %752 = vst [vmem:[%s750 + $0x8] sm:$0xff] %v744
  %753 = vst [vmem:[%s750 + $0x10] sm:$0xff] %v748
  %754 = vst [vmem:[%s750 + $0x18] sm:$0xff] %v748
  // Predicated region
  $region10: #{multi_scale_conv.1} parent=0 // pred_check
    _
  $region11: #{multi_scale_conv.1} parent=0 // pred_check_branch
    %756 = sbr.rel (0) target = $region13
  $region12: #{multi_scale_conv.1} parent=0 // pred_region
    _
  $region13: #{multi_scale_conv.1} parent=0 // pred_fallthru
    _
  // Predicated region
  $region14: #{multi_scale_conv.1} parent=0 // pred_check
    _
  $region15: #{multi_scale_conv.1} parent=0 // pred_check_branch
    %758 = sbr.rel (0) target = $region17
  $region16: #{multi_scale_conv.1} parent=0 // pred_region
    _
  $region17: #{multi_scale_conv.1} parent=0 // pred_fallthru
    _

</llo_original>
